<compile_context>
chip_gen: v5e
topology: v5e:2x2
jax: 0.10.0
libtpu: 0.0.40
codegen_flags: <defaults>
</compile_context>

<pallas_src>
import functools
import math

import jax
import jax.numpy as jnp
import numpy as np
from jax.experimental import pallas as pl
from jax.experimental.pallas import tpu as pltpu

# ---- hyper-parameters (small, consistent with RelaxCriticLSTM.__init__) -----
VOCAB_SIZE = 16
PADDING_IDX = 0
EMBD_DIM = 16
HIDDEN_DIM = 32
NUM_LAYERS = 1          # see NOTE above
BIDIRECTIONAL = False   # see NOTE above
DO_PROB = 0.1           # dropout never applied in forward (inference)
MAX_DIM = 8

BS = 4
BS_PAD = 8              # batch padded to one (8,128) f32 sublane tile
MAXLEN = 8
ZDIM = 5                # z is (bs, ZDIM, ZDIM), ZDIM <= MAX_DIM

D2 = MAX_DIM * MAX_DIM  # 64
FH = 4 * HIDDEN_DIM     # 128 fused gate lanes (order i, f, o, g)

# ---- data slab lane layout: (maxlen*BS_PAD, 128) -----------------------------
LANE_EMB = 0            # lanes [0:EMBD_DIM]      time-major embeddings
LANE_MASK = 64          # lanes [64:64+H]         "t == lens-1" mask, pre-broadcast to H

# ---- weight slab row layout: (SLAB_ROWS, 128) --------------------------------
ROW_WIH = 0             # rows [0:128]   W_ih embedded at rows LANE_EMB:LANE_EMB+E, rest 0
ROW_WHH = 128           # rows [128:160] fused W_hh (H, 4H)
ROW_BLSTM = 160         # b_ih + b_hh fused (1, 4H)
ROW_B1 = 161            # lanes [0:H]
ROW_B2 = 162            # lanes [0:H]
ROW_B3 = 163            # lane  [0:1]
ROW_W3 = 164            # lanes [0:H]   (w3 transposed to a row)
ROW_ZMASK = 165         # lanes [0:D2]
ROW_W1H = 168           # rows [168:200]  w1h, lanes [0:H]
ROW_W1Z = 200           # rows [200:264]  w1z, lanes [0:H]
ROW_W2 = 264            # rows [264:392]  w2 at [0:H, 0:H], rest 0
SLAB_ROWS = 392         # multiple of 8


def _critic_kernel(data_ref, z_ref, w_ref, out_ref, *,
                   bs_pad, maxlen, hidden_dim, n_z):
    H = hidden_dim

    # ---- z statistics: one pass (sum z, sum z^2); independent of the recurrence
    # so the XLU reductions can overlap the MXU/EUP-bound loop below. Padded
    # batch rows / padded grid cells are zero, so plain sums equal masked sums.
    z = z_ref[...]                                            # (bs_pad, D2)
    s1 = jnp.sum(z)
    s2 = jnp.sum(z * z)
    z_mean = s1 / n_z
    z_var = (s2 - s1 * s1 / n_z) / (n_z - 1)                  # torch.std: unbiased
    inv_std = 1.0 / (jnp.sqrt(z_var) + 1e-12)

    # ---- hoisted input projection: all timesteps' x_t @ W_ih in ONE matmul.
    # W_ih is zero-padded to (128,128): the mask lanes of `data` hit zero rows.
    data = data_ref[...]                                      # (maxlen*bs_pad, 128)
    x_proj = (jnp.dot(data, w_ref[ROW_WIH:ROW_WIH + 128, :],
                      preferred_element_type=jnp.float32)
              + w_ref[ROW_BLSTM:ROW_BLSTM + 1, :])            # (maxlen*bs_pad, 4H)

    whh = w_ref[ROW_WHH:ROW_WHH + H, :]                       # (H, 4H), hoisted
    mask_all = data[:, LANE_MASK:LANE_MASK + H]               # (maxlen*bs_pad, H)

    h = jnp.zeros((bs_pad, H), jnp.float32)
    c = jnp.zeros((bs_pad, H), jnp.float32)
    last = jnp.zeros((bs_pad, H), jnp.float32)

    # ---- LSTM recurrence (statically unrolled; h/c/last stay in vregs).
    # Every slice starts at an 8-sublane boundary -> one aligned vreg per step.
    for t in range(maxlen):
        r0 = t * bs_pad
        pre = x_proj[r0:r0 + bs_pad, :] + jnp.dot(
            h, whh, preferred_element_type=jnp.float32)       # (bs_pad, 4H)
        # gate order (i, f, o, g): sigmoid only on the i/f/o block, tanh only on g
        sg = jax.nn.sigmoid(pre[:, :3 * H])
        gg = jnp.tanh(pre[:, 3 * H:])
        c = sg[:, H:2 * H] * c + sg[:, :H] * gg               # f*c + i*g
        h = sg[:, 2 * H:3 * H] * jnp.tanh(c)                  # o*tanh(c)
        # hidden state at the last valid timestep of each sequence
        # (== pack_padded_sequence + out[arange(bs), lens-1]); padded rows stay 0.
        m = mask_all[r0:r0 + bs_pad, :]
        last = m * h + (1.0 - m) * last

    # ---- z normalization (mask keeps padded cells at exactly zero) -----------
    zmask = w_ref[ROW_ZMASK:ROW_ZMASK + 1, 0:D2]              # (1, D2)
    z_in = zmask * (z - z_mean) * inv_std                     # (bs_pad, D2)

    # ---- MLP: Linear -> ReLU -> Linear -> ReLU -> Linear(., 1) ---------------
    # Weights are lane-padded to 128 so h1/h2 stay lane-dense (lanes H:128 == 0).
    h1 = jnp.maximum(
        jnp.dot(last, w_ref[ROW_W1H:ROW_W1H + H, :],
                preferred_element_type=jnp.float32)
        + jnp.dot(z_in, w_ref[ROW_W1Z:ROW_W1Z + D2, :],
                  preferred_element_type=jnp.float32)
        + w_ref[ROW_B1:ROW_B1 + 1, :], 0.0)                   # (bs_pad, 128)
    h2 = jnp.maximum(
        jnp.dot(h1, w_ref[ROW_W2:ROW_W2 + 128, :],
                preferred_element_type=jnp.float32)
        + w_ref[ROW_B2:ROW_B2 + 1, :], 0.0)                   # (bs_pad, 128)
    # final Linear(H, 1): VPU multiply + lane reduce (XLU) instead of 1-lane MXU pop
    out_ref[...] = (jnp.sum(h2 * w_ref[ROW_W3:ROW_W3 + 1, :],
                            axis=-1, keepdims=True)
                    + w_ref[ROW_B3:ROW_B3 + 1, 0:1])


def _build_weight_slab(params, zdim):
    """Pack every small weight/bias/mask operand into one lane-dense (R,128) slab."""
    H = HIDDEN_DIM
    # reorder gates from PyTorch (i, f, g, o) to (i, f, o, g) so sigmoid covers
    # lanes 0:3H and tanh lanes 3H:4H inside the kernel.
    order = np.array([0, 1, 3, 2])
    w_ih = jnp.transpose(params["w_ih"][order], (1, 0, 2)).reshape(EMBD_DIM, FH)
    w_hh = jnp.transpose(params["w_hh"][order], (1, 0, 2)).reshape(H, FH)
    b_lstm = jnp.transpose(params["b_lstm"][order], (1, 0, 2)).reshape(1, FH)

    zmask = (jnp.zeros((MAX_DIM, MAX_DIM), jnp.float32)
             .at[:zdim, :zdim].set(1.0).reshape(1, D2))

    slab = jnp.zeros((SLAB_ROWS, 128), jnp.float32)
    slab = slab.at[ROW_WIH + LANE_EMB:ROW_WIH + LANE_EMB + EMBD_DIM, :].set(w_ih)
    slab = slab.at[ROW_WHH:ROW_WHH + H, :].set(w_hh)
    slab = slab.at[ROW_BLSTM:ROW_BLSTM + 1, :].set(b_lstm)
    slab = slab.at[ROW_B1:ROW_B1 + 1, 0:H].set(params["b1"])
    slab = slab.at[ROW_B2:ROW_B2 + 1, 0:H].set(params["b2"])
    slab = slab.at[ROW_B3:ROW_B3 + 1, 0:1].set(params["b3"])
    slab = slab.at[ROW_W3:ROW_W3 + 1, 0:H].set(params["w3"].T)
    slab = slab.at[ROW_ZMASK:ROW_ZMASK + 1, 0:D2].set(zmask)
    slab = slab.at[ROW_W1H:ROW_W1H + H, 0:H].set(params["w1h"])
    slab = slab.at[ROW_W1Z:ROW_W1Z + D2, 0:H].set(params["w1z"])
    slab = slab.at[ROW_W2:ROW_W2 + H, 0:H].set(params["w2"])
    return slab


def relax_critic_lstm_forward(params, z, x, lengths_x):
    bs, maxlen = x.shape
    zdim = z.shape[1]
    H = HIDDEN_DIM

    # ---- per-call data slab (layout glue, XLA side) ---------------------------
    # lanes [0:E] = time-major embeddings; lanes [64:64+H] = "t == lens-1" mask
    # pre-broadcast to H lanes. Padded batch rows (bs:BS_PAD) stay zero.
    emb = params["emb"][x].astype(jnp.float32)                 # (bs, T, E)
    emb_tm = jnp.transpose(emb, (1, 0, 2))                     # (T, bs, E)
    tpos = jnp.arange(1, maxlen + 1, dtype=jnp.int32)[:, None]
    is_last = (tpos == lengths_x.astype(jnp.int32)[None, :]).astype(jnp.float32)
    mask_tm = jnp.broadcast_to(is_last[:, :, None], (maxlen, bs, H))

    data = jnp.zeros((maxlen, BS_PAD, 128), jnp.float32)
    data = data.at[:, :bs, LANE_EMB:LANE_EMB + EMBD_DIM].set(emb_tm)
    data = data.at[:, :bs, LANE_MASK:LANE_MASK + H].set(mask_tm)
    data = data.reshape(maxlen * BS_PAD, 128)

    # ---- z zero-padded into the max_dim x max_dim grid, batch padded to 8 -----
    z_flat = (jnp.zeros((BS_PAD, MAX_DIM, MAX_DIM), jnp.float32)
              .at[:bs, :zdim, :zdim].set(z.astype(jnp.float32))
              .reshape(BS_PAD, D2))
    n_z = bs * zdim * zdim

    # ---- all weights / biases / masks packed into one VMEM slab ---------------
    wslab = _build_weight_slab(params, zdim)

    vmem = pl.BlockSpec(memory_space=pltpu.MemorySpace.VMEM)
    kernel = functools.partial(_critic_kernel, bs_pad=BS_PAD, maxlen=maxlen,
                               hidden_dim=H, n_z=n_z)
    out = pl.pallas_call(
        kernel,
        out_shape=jax.ShapeDtypeStruct((BS_PAD, 1), jnp.float32),
        in_specs=[vmem, vmem, vmem],
        out_specs=vmem,
    )(data, z_flat, wslab)
    return out[:bs]


# -------------------------- deterministic parameters --------------------------
def init_params(key):
    ks = jax.random.split(key, 10)

    def u(k, shape, scale):
        return jax.random.uniform(k, shape, jnp.float32, -scale, scale)

    emb = u(ks[0], (VOCAB_SIZE, EMBD_DIM), 1.0).at[PADDING_IDX].set(0.0)
    s = 1.0 / math.sqrt(HIDDEN_DIM)
    w_ih = u(ks[1], (4, EMBD_DIM, HIDDEN_DIM), s)      # gates i, f, g, o (PyTorch order)
    w_hh = u(ks[2], (4, HIDDEN_DIM, HIDDEN_DIM), s)
    b_lstm = u(ks[3], (4, 1, HIDDEN_DIM), s)           # b_ih + b_hh combined

    in1 = HIDDEN_DIM + D2
    s1, s2 = 1.0 / math.sqrt(in1), 1.0 / math.sqrt(HIDDEN_DIM)
    w1 = u(ks[4], (in1, HIDDEN_DIM), s1)
    return {
        "emb": emb, "w_ih": w_ih, "w_hh": w_hh, "b_lstm": b_lstm,
        "w1h": w1[:HIDDEN_DIM],                         # multiplies LSTM output
        "w1z": w1[HIDDEN_DIM:],                         # multiplies flattened z
        "b1": u(ks[5], (1, HIDDEN_DIM), s1),
        "w2": u(ks[6], (HIDDEN_DIM, HIDDEN_DIM), s2),
        "b2": u(ks[7], (1, HIDDEN_DIM), s2),
        "w3": u(ks[8], (HIDDEN_DIM, 1), s2),
        "b3": u(ks[9], (1, 1), s2),
    }


# ------------------------------ pure-JAX reference -----------------------------
def reference_forward(params, z, x, lengths_x):
    bs, maxlen = x.shape
    zdim = z.shape[1]
    zn = (z - jnp.mean(z)) / (jnp.std(z, ddof=1) + 1e-12)
    emb = params["emb"][x]

    def step(carry, xt):
        h, c = carry
        g = [xt @ params["w_ih"][k] + h @ params["w_hh"][k] + params["b_lstm"][k]
             for k in range(4)]
        i, f = jax.nn.sigmoid(g[0]), jax.nn.sigmoid(g[1])
        gg, o = jnp.tanh(g[2]), jax.nn.sigmoid(g[3])
        c = f * c + i * gg
        h = o * jnp.tanh(c)
        return (h, c), h

    h0 = jnp.zeros((bs, HIDDEN_DIM), jnp.float32)
    _, hs = jax.lax.scan(step, (h0, h0), jnp.transpose(emb, (1, 0, 2)))
    hs = jnp.transpose(hs, (1, 0, 2))
    out_last = hs[jnp.arange(bs), lengths_x - 1, :]

    z_pad = (jnp.zeros((bs, MAX_DIM, MAX_DIM), jnp.float32)
             .at[:, :zdim, :zdim].set(zn).reshape(bs, -1))
    mlp_in = jnp.concatenate([out_last, z_pad], axis=-1)
    w1 = jnp.concatenate([params["w1h"], params["w1z"]], axis=0)
    h1 = jax.nn.relu(mlp_in @ w1 + params["b1"])
    h2 = jax.nn.relu(h1 @ params["w2"] + params["b2"])
    return h2 @ params["w3"] + params["b3"]


if __name__ == "__main__":
    key = jax.random.PRNGKey(0)
    kp, kz, kx, kl = jax.random.split(key, 4)

    params = init_params(kp)
    z = jax.random.normal(kz, (BS, ZDIM, ZDIM), jnp.float32)
    lengths_x = jax.random.randint(kl, (BS,), 1, MAXLEN + 1).astype(jnp.int32)
    x = jax.random.randint(kx, (BS, MAXLEN), 1, VOCAB_SIZE).astype(jnp.int32)
    # zero out (padding_idx) tokens past each sequence length, like real data
    pos = jnp.arange(MAXLEN)[None, :]
    x = jnp.where(pos < lengths_x[:, None], x, PADDING_IDX)

    out = relax_critic_lstm_forward(params, z, x, lengths_x)
    out = jax.block_until_ready(out)

    ref = jax.block_until_ready(reference_forward(params, z, x, lengths_x))
    np.testing.assert_allclose(np.asarray(out), np.asarray(ref),
                               rtol=2e-3, atol=2e-3)
    assert out.shape == (BS, 1)
    print("KERNEL_OK")
</pallas_src>

<mosaic_0001>
module attributes {stable_mosaic.version = 11 : i64} {
  func.func @_critic_kernel(%arg0: memref<64x128xf32, #tpu.memory_space<vmem>>, %arg1: memref<8x64xf32, #tpu.memory_space<vmem>>, %arg2: memref<392x128xf32, #tpu.memory_space<vmem>>, %arg3: memref<8x1xf32, #tpu.memory_space<vmem>>) attributes {dimension_semantics = [], scalar_prefetch = 0 : i64, scratch_operands = 0 : i64, tpu.core_type = #tpu.core_type<tc>} {
    %c0 = arith.constant 0 : index
    %c0_0 = arith.constant 0 : index
    %0 = vector.load %arg1[%c0, %c0_0] : memref<8x64xf32, #tpu.memory_space<vmem>>, vector<8x64xf32>
    %1 = vector.shape_cast %0 : vector<8x64xf32> to vector<1x8x64xf32>
    %cst = arith.constant dense<0.000000e+00> : vector<1xf32>
    %2 = vector.multi_reduction <add>, %1, %cst [1, 2] : vector<1x8x64xf32> to vector<1xf32>
    %3 = vector.shape_cast %2 : vector<1xf32> to vector<1x1x1xf32>
    %4 = vector.extract %3[0, 0, 0] : f32 from vector<1x1x1xf32>
    %5 = arith.mulf %0, %0 : vector<8x64xf32>
    %6 = vector.shape_cast %5 : vector<8x64xf32> to vector<1x8x64xf32>
    %cst_1 = arith.constant dense<0.000000e+00> : vector<1xf32>
    %7 = vector.multi_reduction <add>, %6, %cst_1 [1, 2] : vector<1x8x64xf32> to vector<1xf32>
    %8 = vector.shape_cast %7 : vector<1xf32> to vector<1x1x1xf32>
    %9 = vector.extract %8[0, 0, 0] : f32 from vector<1x1x1xf32>
    %cst_2 = arith.constant 1.000000e+02 : f32
    %10 = arith.divf %4, %cst_2 : f32
    %11 = arith.mulf %4, %4 : f32
    %cst_3 = arith.constant 1.000000e+02 : f32
    %12 = arith.divf %11, %cst_3 : f32
    %13 = arith.subf %9, %12 : f32
    %cst_4 = arith.constant 9.900000e+01 : f32
    %14 = arith.divf %13, %cst_4 : f32
    %15 = math.sqrt %14 : f32
    %cst_5 = arith.constant 9.99999996E-13 : f32
    %16 = arith.addf %15, %cst_5 : f32
    %cst_6 = arith.constant 1.000000e+00 : f32
    %17 = arith.divf %cst_6, %16 : f32
    %c0_7 = arith.constant 0 : index
    %c0_8 = arith.constant 0 : index
    %18 = vector.load %arg0[%c0_7, %c0_8] : memref<64x128xf32, #tpu.memory_space<vmem>>, vector<64x128xf32>
    %c0_9 = arith.constant 0 : index
    %c0_10 = arith.constant 0 : index
    %19 = vector.load %arg2[%c0_9, %c0_10] : memref<392x128xf32, #tpu.memory_space<vmem>>, vector<128x128xf32>
    %cst_11 = arith.constant dense<0.000000e+00> : vector<64x128xf32>
    %20 = tpu.matmul %18, %19, %cst_11 {dimension_numbers = #tpu.dot_dimension_numbers<[1], [0], [0], [1], [0, 0, 1, 1], [], []>} : vector<64x128xf32>, vector<128x128xf32>, vector<64x128xf32> -> vector<64x128xf32>
    %c160 = arith.constant 160 : index
    %c0_12 = arith.constant 0 : index
    %21 = vector.load %arg2[%c160, %c0_12] : memref<392x128xf32, #tpu.memory_space<vmem>>, vector<1x128xf32>
    %22 = vector.broadcast %21 : vector<1x128xf32> to vector<64x128xf32>
    %23 = arith.addf %20, %22 : vector<64x128xf32>
    %c128 = arith.constant 128 : index
    %c0_13 = arith.constant 0 : index
    %24 = vector.load %arg2[%c128, %c0_13] : memref<392x128xf32, #tpu.memory_space<vmem>>, vector<32x128xf32>
    %25 = vector.extract_strided_slice %18 {offsets = [0, 64], sizes = [64, 32], strides = [1, 1]} : vector<64x128xf32> to vector<64x32xf32>
    %cst_14 = arith.constant 0.000000e+00 : f32
    %26 = vector.broadcast %cst_14 : f32 to vector<8x32xf32>
    %cst_15 = arith.constant 0.000000e+00 : f32
    %27 = vector.broadcast %cst_15 : f32 to vector<8x32xf32>
    %cst_16 = arith.constant 0.000000e+00 : f32
    %28 = vector.broadcast %cst_16 : f32 to vector<8x32xf32>
    %29 = vector.extract_strided_slice %23 {offsets = [0, 0], sizes = [8, 128], strides = [1, 1]} : vector<64x128xf32> to vector<8x128xf32>
    %cst_17 = arith.constant dense<0.000000e+00> : vector<8x128xf32>
    %30 = tpu.matmul %26, %24, %cst_17 {dimension_numbers = #tpu.dot_dimension_numbers<[1], [0], [0], [1], [0, 0, 1, 1], [], []>} : vector<8x32xf32>, vector<32x128xf32>, vector<8x128xf32> -> vector<8x128xf32>
    %31 = arith.addf %29, %30 : vector<8x128xf32>
    %32 = vector.extract_strided_slice %31 {offsets = [0, 0], sizes = [8, 96], strides = [1, 1]} : vector<8x128xf32> to vector<8x96xf32>
    %33 = arith.negf %32 : vector<8x96xf32>
    %34 = math.exp %33 : vector<8x96xf32>
    %cst_18 = arith.constant 1.000000e+00 : f32
    %35 = vector.broadcast %cst_18 : f32 to vector<8x96xf32>
    %36 = arith.addf %35, %34 : vector<8x96xf32>
    %37 = arith.divf %35, %36 : vector<8x96xf32>
    %38 = vector.extract_strided_slice %31 {offsets = [0, 96], sizes = [8, 32], strides = [1, 1]} : vector<8x128xf32> to vector<8x32xf32>
    %39 = math.tanh %38 : vector<8x32xf32>
    %40 = vector.extract_strided_slice %37 {offsets = [0, 32], sizes = [8, 32], strides = [1, 1]} : vector<8x96xf32> to vector<8x32xf32>
    %41 = arith.mulf %40, %27 : vector<8x32xf32>
    %42 = vector.extract_strided_slice %37 {offsets = [0, 0], sizes = [8, 32], strides = [1, 1]} : vector<8x96xf32> to vector<8x32xf32>
    %43 = arith.mulf %42, %39 : vector<8x32xf32>
    %44 = arith.addf %41, %43 : vector<8x32xf32>
    %45 = vector.extract_strided_slice %37 {offsets = [0, 64], sizes = [8, 32], strides = [1, 1]} : vector<8x96xf32> to vector<8x32xf32>
    %46 = math.tanh %44 : vector<8x32xf32>
    %47 = arith.mulf %45, %46 : vector<8x32xf32>
    %48 = vector.extract_strided_slice %25 {offsets = [0, 0], sizes = [8, 32], strides = [1, 1]} : vector<64x32xf32> to vector<8x32xf32>
    %49 = arith.mulf %48, %47 : vector<8x32xf32>
    %cst_19 = arith.constant 1.000000e+00 : f32
    %50 = vector.broadcast %cst_19 : f32 to vector<8x32xf32>
    %51 = arith.subf %50, %48 : vector<8x32xf32>
    %52 = arith.mulf %51, %28 : vector<8x32xf32>
    %53 = arith.addf %49, %52 : vector<8x32xf32>
    %54 = vector.extract_strided_slice %23 {offsets = [8, 0], sizes = [8, 128], strides = [1, 1]} : vector<64x128xf32> to vector<8x128xf32>
    %cst_20 = arith.constant dense<0.000000e+00> : vector<8x128xf32>
    %55 = tpu.matmul %47, %24, %cst_20 {dimension_numbers = #tpu.dot_dimension_numbers<[1], [0], [0], [1], [0, 0, 1, 1], [], []>} : vector<8x32xf32>, vector<32x128xf32>, vector<8x128xf32> -> vector<8x128xf32>
    %56 = arith.addf %54, %55 : vector<8x128xf32>
    %57 = vector.extract_strided_slice %56 {offsets = [0, 0], sizes = [8, 96], strides = [1, 1]} : vector<8x128xf32> to vector<8x96xf32>
    %58 = arith.negf %57 : vector<8x96xf32>
    %59 = math.exp %58 : vector<8x96xf32>
    %cst_21 = arith.constant 1.000000e+00 : f32
    %60 = vector.broadcast %cst_21 : f32 to vector<8x96xf32>
    %61 = arith.addf %60, %59 : vector<8x96xf32>
    %62 = arith.divf %60, %61 : vector<8x96xf32>
    %63 = vector.extract_strided_slice %56 {offsets = [0, 96], sizes = [8, 32], strides = [1, 1]} : vector<8x128xf32> to vector<8x32xf32>
    %64 = math.tanh %63 : vector<8x32xf32>
    %65 = vector.extract_strided_slice %62 {offsets = [0, 32], sizes = [8, 32], strides = [1, 1]} : vector<8x96xf32> to vector<8x32xf32>
    %66 = arith.mulf %65, %44 : vector<8x32xf32>
    %67 = vector.extract_strided_slice %62 {offsets = [0, 0], sizes = [8, 32], strides = [1, 1]} : vector<8x96xf32> to vector<8x32xf32>
    %68 = arith.mulf %67, %64 : vector<8x32xf32>
    %69 = arith.addf %66, %68 : vector<8x32xf32>
    %70 = vector.extract_strided_slice %62 {offsets = [0, 64], sizes = [8, 32], strides = [1, 1]} : vector<8x96xf32> to vector<8x32xf32>
    %71 = math.tanh %69 : vector<8x32xf32>
    %72 = arith.mulf %70, %71 : vector<8x32xf32>
    %73 = vector.extract_strided_slice %25 {offsets = [8, 0], sizes = [8, 32], strides = [1, 1]} : vector<64x32xf32> to vector<8x32xf32>
    %74 = arith.mulf %73, %72 : vector<8x32xf32>
    %cst_22 = arith.constant 1.000000e+00 : f32
    %75 = vector.broadcast %cst_22 : f32 to vector<8x32xf32>
    %76 = arith.subf %75, %73 : vector<8x32xf32>
    %77 = arith.mulf %76, %53 : vector<8x32xf32>
    %78 = arith.addf %74, %77 : vector<8x32xf32>
    %79 = vector.extract_strided_slice %23 {offsets = [16, 0], sizes = [8, 128], strides = [1, 1]} : vector<64x128xf32> to vector<8x128xf32>
    %cst_23 = arith.constant dense<0.000000e+00> : vector<8x128xf32>
    %80 = tpu.matmul %72, %24, %cst_23 {dimension_numbers = #tpu.dot_dimension_numbers<[1], [0], [0], [1], [0, 0, 1, 1], [], []>} : vector<8x32xf32>, vector<32x128xf32>, vector<8x128xf32> -> vector<8x128xf32>
    %81 = arith.addf %79, %80 : vector<8x128xf32>
    %82 = vector.extract_strided_slice %81 {offsets = [0, 0], sizes = [8, 96], strides = [1, 1]} : vector<8x128xf32> to vector<8x96xf32>
    %83 = arith.negf %82 : vector<8x96xf32>
    %84 = math.exp %83 : vector<8x96xf32>
    %cst_24 = arith.constant 1.000000e+00 : f32
    %85 = vector.broadcast %cst_24 : f32 to vector<8x96xf32>
    %86 = arith.addf %85, %84 : vector<8x96xf32>
    %87 = arith.divf %85, %86 : vector<8x96xf32>
    %88 = vector.extract_strided_slice %81 {offsets = [0, 96], sizes = [8, 32], strides = [1, 1]} : vector<8x128xf32> to vector<8x32xf32>
    %89 = math.tanh %88 : vector<8x32xf32>
    %90 = vector.extract_strided_slice %87 {offsets = [0, 32], sizes = [8, 32], strides = [1, 1]} : vector<8x96xf32> to vector<8x32xf32>
    %91 = arith.mulf %90, %69 : vector<8x32xf32>
    %92 = vector.extract_strided_slice %87 {offsets = [0, 0], sizes = [8, 32], strides = [1, 1]} : vector<8x96xf32> to vector<8x32xf32>
    %93 = arith.mulf %92, %89 : vector<8x32xf32>
    %94 = arith.addf %91, %93 : vector<8x32xf32>
    %95 = vector.extract_strided_slice %87 {offsets = [0, 64], sizes = [8, 32], strides = [1, 1]} : vector<8x96xf32> to vector<8x32xf32>
    %96 = math.tanh %94 : vector<8x32xf32>
    %97 = arith.mulf %95, %96 : vector<8x32xf32>
    %98 = vector.extract_strided_slice %25 {offsets = [16, 0], sizes = [8, 32], strides = [1, 1]} : vector<64x32xf32> to vector<8x32xf32>
    %99 = arith.mulf %98, %97 : vector<8x32xf32>
    %cst_25 = arith.constant 1.000000e+00 : f32
    %100 = vector.broadcast %cst_25 : f32 to vector<8x32xf32>
    %101 = arith.subf %100, %98 : vector<8x32xf32>
    %102 = arith.mulf %101, %78 : vector<8x32xf32>
    %103 = arith.addf %99, %102 : vector<8x32xf32>
    %104 = vector.extract_strided_slice %23 {offsets = [24, 0], sizes = [8, 128], strides = [1, 1]} : vector<64x128xf32> to vector<8x128xf32>
    %cst_26 = arith.constant dense<0.000000e+00> : vector<8x128xf32>
    %105 = tpu.matmul %97, %24, %cst_26 {dimension_numbers = #tpu.dot_dimension_numbers<[1], [0], [0], [1], [0, 0, 1, 1], [], []>} : vector<8x32xf32>, vector<32x128xf32>, vector<8x128xf32> -> vector<8x128xf32>
    %106 = arith.addf %104, %105 : vector<8x128xf32>
    %107 = vector.extract_strided_slice %106 {offsets = [0, 0], sizes = [8, 96], strides = [1, 1]} : vector<8x128xf32> to vector<8x96xf32>
    %108 = arith.negf %107 : vector<8x96xf32>
    %109 = math.exp %108 : vector<8x96xf32>
    %cst_27 = arith.constant 1.000000e+00 : f32
    %110 = vector.broadcast %cst_27 : f32 to vector<8x96xf32>
    %111 = arith.addf %110, %109 : vector<8x96xf32>
    %112 = arith.divf %110, %111 : vector<8x96xf32>
    %113 = vector.extract_strided_slice %106 {offsets = [0, 96], sizes = [8, 32], strides = [1, 1]} : vector<8x128xf32> to vector<8x32xf32>
    %114 = math.tanh %113 : vector<8x32xf32>
    %115 = vector.extract_strided_slice %112 {offsets = [0, 32], sizes = [8, 32], strides = [1, 1]} : vector<8x96xf32> to vector<8x32xf32>
    %116 = arith.mulf %115, %94 : vector<8x32xf32>
    %117 = vector.extract_strided_slice %112 {offsets = [0, 0], sizes = [8, 32], strides = [1, 1]} : vector<8x96xf32> to vector<8x32xf32>
    %118 = arith.mulf %117, %114 : vector<8x32xf32>
    %119 = arith.addf %116, %118 : vector<8x32xf32>
    %120 = vector.extract_strided_slice %112 {offsets = [0, 64], sizes = [8, 32], strides = [1, 1]} : vector<8x96xf32> to vector<8x32xf32>
    %121 = math.tanh %119 : vector<8x32xf32>
    %122 = arith.mulf %120, %121 : vector<8x32xf32>
    %123 = vector.extract_strided_slice %25 {offsets = [24, 0], sizes = [8, 32], strides = [1, 1]} : vector<64x32xf32> to vector<8x32xf32>
    %124 = arith.mulf %123, %122 : vector<8x32xf32>
    %cst_28 = arith.constant 1.000000e+00 : f32
    %125 = vector.broadcast %cst_28 : f32 to vector<8x32xf32>
    %126 = arith.subf %125, %123 : vector<8x32xf32>
    %127 = arith.mulf %126, %103 : vector<8x32xf32>
    %128 = arith.addf %124, %127 : vector<8x32xf32>
    %129 = vector.extract_strided_slice %23 {offsets = [32, 0], sizes = [8, 128], strides = [1, 1]} : vector<64x128xf32> to vector<8x128xf32>
    %cst_29 = arith.constant dense<0.000000e+00> : vector<8x128xf32>
    %130 = tpu.matmul %122, %24, %cst_29 {dimension_numbers = #tpu.dot_dimension_numbers<[1], [0], [0], [1], [0, 0, 1, 1], [], []>} : vector<8x32xf32>, vector<32x128xf32>, vector<8x128xf32> -> vector<8x128xf32>
    %131 = arith.addf %129, %130 : vector<8x128xf32>
    %132 = vector.extract_strided_slice %131 {offsets = [0, 0], sizes = [8, 96], strides = [1, 1]} : vector<8x128xf32> to vector<8x96xf32>
    %133 = arith.negf %132 : vector<8x96xf32>
    %134 = math.exp %133 : vector<8x96xf32>
    %cst_30 = arith.constant 1.000000e+00 : f32
    %135 = vector.broadcast %cst_30 : f32 to vector<8x96xf32>
    %136 = arith.addf %135, %134 : vector<8x96xf32>
    %137 = arith.divf %135, %136 : vector<8x96xf32>
    %138 = vector.extract_strided_slice %131 {offsets = [0, 96], sizes = [8, 32], strides = [1, 1]} : vector<8x128xf32> to vector<8x32xf32>
    %139 = math.tanh %138 : vector<8x32xf32>
    %140 = vector.extract_strided_slice %137 {offsets = [0, 32], sizes = [8, 32], strides = [1, 1]} : vector<8x96xf32> to vector<8x32xf32>
    %141 = arith.mulf %140, %119 : vector<8x32xf32>
    %142 = vector.extract_strided_slice %137 {offsets = [0, 0], sizes = [8, 32], strides = [1, 1]} : vector<8x96xf32> to vector<8x32xf32>
    %143 = arith.mulf %142, %139 : vector<8x32xf32>
    %144 = arith.addf %141, %143 : vector<8x32xf32>
    %145 = vector.extract_strided_slice %137 {offsets = [0, 64], sizes = [8, 32], strides = [1, 1]} : vector<8x96xf32> to vector<8x32xf32>
    %146 = math.tanh %144 : vector<8x32xf32>
    %147 = arith.mulf %145, %146 : vector<8x32xf32>
    %148 = vector.extract_strided_slice %25 {offsets = [32, 0], sizes = [8, 32], strides = [1, 1]} : vector<64x32xf32> to vector<8x32xf32>
    %149 = arith.mulf %148, %147 : vector<8x32xf32>
    %cst_31 = arith.constant 1.000000e+00 : f32
    %150 = vector.broadcast %cst_31 : f32 to vector<8x32xf32>
    %151 = arith.subf %150, %148 : vector<8x32xf32>
    %152 = arith.mulf %151, %128 : vector<8x32xf32>
    %153 = arith.addf %149, %152 : vector<8x32xf32>
    %154 = vector.extract_strided_slice %23 {offsets = [40, 0], sizes = [8, 128], strides = [1, 1]} : vector<64x128xf32> to vector<8x128xf32>
    %cst_32 = arith.constant dense<0.000000e+00> : vector<8x128xf32>
    %155 = tpu.matmul %147, %24, %cst_32 {dimension_numbers = #tpu.dot_dimension_numbers<[1], [0], [0], [1], [0, 0, 1, 1], [], []>} : vector<8x32xf32>, vector<32x128xf32>, vector<8x128xf32> -> vector<8x128xf32>
    %156 = arith.addf %154, %155 : vector<8x128xf32>
    %157 = vector.extract_strided_slice %156 {offsets = [0, 0], sizes = [8, 96], strides = [1, 1]} : vector<8x128xf32> to vector<8x96xf32>
    %158 = arith.negf %157 : vector<8x96xf32>
    %159 = math.exp %158 : vector<8x96xf32>
    %cst_33 = arith.constant 1.000000e+00 : f32
    %160 = vector.broadcast %cst_33 : f32 to vector<8x96xf32>
    %161 = arith.addf %160, %159 : vector<8x96xf32>
    %162 = arith.divf %160, %161 : vector<8x96xf32>
    %163 = vector.extract_strided_slice %156 {offsets = [0, 96], sizes = [8, 32], strides = [1, 1]} : vector<8x128xf32> to vector<8x32xf32>
    %164 = math.tanh %163 : vector<8x32xf32>
    %165 = vector.extract_strided_slice %162 {offsets = [0, 32], sizes = [8, 32], strides = [1, 1]} : vector<8x96xf32> to vector<8x32xf32>
    %166 = arith.mulf %165, %144 : vector<8x32xf32>
    %167 = vector.extract_strided_slice %162 {offsets = [0, 0], sizes = [8, 32], strides = [1, 1]} : vector<8x96xf32> to vector<8x32xf32>
    %168 = arith.mulf %167, %164 : vector<8x32xf32>
    %169 = arith.addf %166, %168 : vector<8x32xf32>
    %170 = vector.extract_strided_slice %162 {offsets = [0, 64], sizes = [8, 32], strides = [1, 1]} : vector<8x96xf32> to vector<8x32xf32>
    %171 = math.tanh %169 : vector<8x32xf32>
    %172 = arith.mulf %170, %171 : vector<8x32xf32>
    %173 = vector.extract_strided_slice %25 {offsets = [40, 0], sizes = [8, 32], strides = [1, 1]} : vector<64x32xf32> to vector<8x32xf32>
    %174 = arith.mulf %173, %172 : vector<8x32xf32>
    %cst_34 = arith.constant 1.000000e+00 : f32
    %175 = vector.broadcast %cst_34 : f32 to vector<8x32xf32>
    %176 = arith.subf %175, %173 : vector<8x32xf32>
    %177 = arith.mulf %176, %153 : vector<8x32xf32>
    %178 = arith.addf %174, %177 : vector<8x32xf32>
    %179 = vector.extract_strided_slice %23 {offsets = [48, 0], sizes = [8, 128], strides = [1, 1]} : vector<64x128xf32> to vector<8x128xf32>
    %cst_35 = arith.constant dense<0.000000e+00> : vector<8x128xf32>
    %180 = tpu.matmul %172, %24, %cst_35 {dimension_numbers = #tpu.dot_dimension_numbers<[1], [0], [0], [1], [0, 0, 1, 1], [], []>} : vector<8x32xf32>, vector<32x128xf32>, vector<8x128xf32> -> vector<8x128xf32>
    %181 = arith.addf %179, %180 : vector<8x128xf32>
    %182 = vector.extract_strided_slice %181 {offsets = [0, 0], sizes = [8, 96], strides = [1, 1]} : vector<8x128xf32> to vector<8x96xf32>
    %183 = arith.negf %182 : vector<8x96xf32>
    %184 = math.exp %183 : vector<8x96xf32>
    %cst_36 = arith.constant 1.000000e+00 : f32
    %185 = vector.broadcast %cst_36 : f32 to vector<8x96xf32>
    %186 = arith.addf %185, %184 : vector<8x96xf32>
    %187 = arith.divf %185, %186 : vector<8x96xf32>
    %188 = vector.extract_strided_slice %181 {offsets = [0, 96], sizes = [8, 32], strides = [1, 1]} : vector<8x128xf32> to vector<8x32xf32>
    %189 = math.tanh %188 : vector<8x32xf32>
    %190 = vector.extract_strided_slice %187 {offsets = [0, 32], sizes = [8, 32], strides = [1, 1]} : vector<8x96xf32> to vector<8x32xf32>
    %191 = arith.mulf %190, %169 : vector<8x32xf32>
    %192 = vector.extract_strided_slice %187 {offsets = [0, 0], sizes = [8, 32], strides = [1, 1]} : vector<8x96xf32> to vector<8x32xf32>
    %193 = arith.mulf %192, %189 : vector<8x32xf32>
    %194 = arith.addf %191, %193 : vector<8x32xf32>
    %195 = vector.extract_strided_slice %187 {offsets = [0, 64], sizes = [8, 32], strides = [1, 1]} : vector<8x96xf32> to vector<8x32xf32>
    %196 = math.tanh %194 : vector<8x32xf32>
    %197 = arith.mulf %195, %196 : vector<8x32xf32>
    %198 = vector.extract_strided_slice %25 {offsets = [48, 0], sizes = [8, 32], strides = [1, 1]} : vector<64x32xf32> to vector<8x32xf32>
    %199 = arith.mulf %198, %197 : vector<8x32xf32>
    %cst_37 = arith.constant 1.000000e+00 : f32
    %200 = vector.broadcast %cst_37 : f32 to vector<8x32xf32>
    %201 = arith.subf %200, %198 : vector<8x32xf32>
    %202 = arith.mulf %201, %178 : vector<8x32xf32>
    %203 = arith.addf %199, %202 : vector<8x32xf32>
    %204 = vector.extract_strided_slice %23 {offsets = [56, 0], sizes = [8, 128], strides = [1, 1]} : vector<64x128xf32> to vector<8x128xf32>
    %cst_38 = arith.constant dense<0.000000e+00> : vector<8x128xf32>
    %205 = tpu.matmul %197, %24, %cst_38 {dimension_numbers = #tpu.dot_dimension_numbers<[1], [0], [0], [1], [0, 0, 1, 1], [], []>} : vector<8x32xf32>, vector<32x128xf32>, vector<8x128xf32> -> vector<8x128xf32>
    %206 = arith.addf %204, %205 : vector<8x128xf32>
    %207 = vector.extract_strided_slice %206 {offsets = [0, 0], sizes = [8, 96], strides = [1, 1]} : vector<8x128xf32> to vector<8x96xf32>
    %208 = arith.negf %207 : vector<8x96xf32>
    %209 = math.exp %208 : vector<8x96xf32>
    %cst_39 = arith.constant 1.000000e+00 : f32
    %210 = vector.broadcast %cst_39 : f32 to vector<8x96xf32>
    %211 = arith.addf %210, %209 : vector<8x96xf32>
    %212 = arith.divf %210, %211 : vector<8x96xf32>
    %213 = vector.extract_strided_slice %206 {offsets = [0, 96], sizes = [8, 32], strides = [1, 1]} : vector<8x128xf32> to vector<8x32xf32>
    %214 = math.tanh %213 : vector<8x32xf32>
    %215 = vector.extract_strided_slice %212 {offsets = [0, 32], sizes = [8, 32], strides = [1, 1]} : vector<8x96xf32> to vector<8x32xf32>
    %216 = arith.mulf %215, %194 : vector<8x32xf32>
    %217 = vector.extract_strided_slice %212 {offsets = [0, 0], sizes = [8, 32], strides = [1, 1]} : vector<8x96xf32> to vector<8x32xf32>
    %218 = arith.mulf %217, %214 : vector<8x32xf32>
    %219 = arith.addf %216, %218 : vector<8x32xf32>
    %220 = vector.extract_strided_slice %212 {offsets = [0, 64], sizes = [8, 32], strides = [1, 1]} : vector<8x96xf32> to vector<8x32xf32>
    %221 = math.tanh %219 : vector<8x32xf32>
    %222 = arith.mulf %220, %221 : vector<8x32xf32>
    %223 = vector.extract_strided_slice %25 {offsets = [56, 0], sizes = [8, 32], strides = [1, 1]} : vector<64x32xf32> to vector<8x32xf32>
    %224 = arith.mulf %223, %222 : vector<8x32xf32>
    %cst_40 = arith.constant 1.000000e+00 : f32
    %225 = vector.broadcast %cst_40 : f32 to vector<8x32xf32>
    %226 = arith.subf %225, %223 : vector<8x32xf32>
    %227 = arith.mulf %226, %203 : vector<8x32xf32>
    %228 = arith.addf %224, %227 : vector<8x32xf32>
    %c165 = arith.constant 165 : index
    %c0_41 = arith.constant 0 : index
    %229 = vector.load %arg2[%c165, %c0_41] : memref<392x128xf32, #tpu.memory_space<vmem>>, vector<1x64xf32>
    %230 = vector.broadcast %10 : f32 to vector<8x64xf32>
    %231 = arith.subf %0, %230 : vector<8x64xf32>
    %232 = vector.broadcast %229 : vector<1x64xf32> to vector<8x64xf32>
    %233 = arith.mulf %232, %231 : vector<8x64xf32>
    %234 = vector.broadcast %17 : f32 to vector<8x64xf32>
    %235 = arith.mulf %233, %234 : vector<8x64xf32>
    %c168 = arith.constant 168 : index
    %c0_42 = arith.constant 0 : index
    %236 = vector.load %arg2[%c168, %c0_42] : memref<392x128xf32, #tpu.memory_space<vmem>>, vector<32x128xf32>
    %cst_43 = arith.constant dense<0.000000e+00> : vector<8x128xf32>
    %237 = tpu.matmul %228, %236, %cst_43 {dimension_numbers = #tpu.dot_dimension_numbers<[1], [0], [0], [1], [0, 0, 1, 1], [], []>} : vector<8x32xf32>, vector<32x128xf32>, vector<8x128xf32> -> vector<8x128xf32>
    %c200 = arith.constant 200 : index
    %c0_44 = arith.constant 0 : index
    %238 = vector.load %arg2[%c200, %c0_44] : memref<392x128xf32, #tpu.memory_space<vmem>>, vector<64x128xf32>
    %cst_45 = arith.constant dense<0.000000e+00> : vector<8x128xf32>
    %239 = tpu.matmul %235, %238, %cst_45 {dimension_numbers = #tpu.dot_dimension_numbers<[1], [0], [0], [1], [0, 0, 1, 1], [], []>} : vector<8x64xf32>, vector<64x128xf32>, vector<8x128xf32> -> vector<8x128xf32>
    %240 = arith.addf %237, %239 : vector<8x128xf32>
    %c161 = arith.constant 161 : index
    %c0_46 = arith.constant 0 : index
    %241 = vector.load %arg2[%c161, %c0_46] : memref<392x128xf32, #tpu.memory_space<vmem>>, vector<1x128xf32>
    %242 = vector.broadcast %241 : vector<1x128xf32> to vector<8x128xf32>
    %243 = arith.addf %240, %242 : vector<8x128xf32>
    %cst_47 = arith.constant 0.000000e+00 : f32
    %244 = vector.broadcast %cst_47 : f32 to vector<8x128xf32>
    %245 = arith.maximumf %243, %244 : vector<8x128xf32>
    %c264 = arith.constant 264 : index
    %c0_48 = arith.constant 0 : index
    %246 = vector.load %arg2[%c264, %c0_48] : memref<392x128xf32, #tpu.memory_space<vmem>>, vector<128x128xf32>
    %cst_49 = arith.constant dense<0.000000e+00> : vector<8x128xf32>
    %247 = tpu.matmul %245, %246, %cst_49 {dimension_numbers = #tpu.dot_dimension_numbers<[1], [0], [0], [1], [0, 0, 1, 1], [], []>} : vector<8x128xf32>, vector<128x128xf32>, vector<8x128xf32> -> vector<8x128xf32>
    %c162 = arith.constant 162 : index
    %c0_50 = arith.constant 0 : index
    %248 = vector.load %arg2[%c162, %c0_50] : memref<392x128xf32, #tpu.memory_space<vmem>>, vector<1x128xf32>
    %249 = vector.broadcast %248 : vector<1x128xf32> to vector<8x128xf32>
    %250 = arith.addf %247, %249 : vector<8x128xf32>
    %cst_51 = arith.constant 0.000000e+00 : f32
    %251 = vector.broadcast %cst_51 : f32 to vector<8x128xf32>
    %252 = arith.maximumf %250, %251 : vector<8x128xf32>
    %c164 = arith.constant 164 : index
    %c0_52 = arith.constant 0 : index
    %253 = vector.load %arg2[%c164, %c0_52] : memref<392x128xf32, #tpu.memory_space<vmem>>, vector<1x128xf32>
    %254 = vector.broadcast %253 : vector<1x128xf32> to vector<8x128xf32>
    %255 = arith.mulf %252, %254 : vector<8x128xf32>
    %cst_53 = arith.constant dense<0.000000e+00> : vector<8xf32>
    %256 = vector.multi_reduction <add>, %255, %cst_53 [1] : vector<8x128xf32> to vector<8xf32>
    %257 = vector.shape_cast %256 : vector<8xf32> to vector<8x1xf32>
    %c163 = arith.constant 163 : index
    %c0_54 = arith.constant 0 : index
    %258 = vector.load %arg2[%c163, %c0_54] : memref<392x128xf32, #tpu.memory_space<vmem>>, vector<1x1xf32>
    %259 = vector.broadcast %258 : vector<1x1xf32> to vector<8x1xf32>
    %260 = arith.addf %257, %259 : vector<8x1xf32>
    %c0_55 = arith.constant 0 : index
    %c0_56 = arith.constant 0 : index
    %261 = vector.load %arg3[%c0_55, %c0_56] : memref<8x1xf32, #tpu.memory_space<vmem>>, vector<8x1xf32>
    tpu.vector_store %arg3[%c0_55, %c0_56], %260 {strides = array<i32>} : memref<8x1xf32, #tpu.memory_space<vmem>>, vector<8x1xf32>,
    return
  }
}

</mosaic_0001>

<llo_original>
// kernel: tpu_custom_call.1
$region0: #{tpu_custom_call.1}
  #allocation0 [shape = 'u32[]', space=smem, size = 0x4, offset = 0x4, fixed_abs, tag = 'smem constant byte address 0x4 - core index']
  #allocation1 [shape = 'u32[72,128]{1,0:T(1,128)}', space=vmem, size = 0x9000, scoped, tag = 'internal scratch']
  %s0 = inlined_call_operand.hbm [shape: f32[64,128], index: 0, kind: input, shape index: {}]
  %s1 = inlined_call_operand.hbm [shape: f32[8,64], index: 1, kind: input, shape index: {}]
  %s2 = inlined_call_operand.hbm [shape: f32[392,128], index: 2, kind: input, shape index: {}]
  %s3 = inlined_call_operand.vmem [shape: f32[8,1], index: 3, kind: output, shape index: {}]
  %s4 = sld [smem:[#allocation0]]
  $region34: #{tpu_custom_call.1} parent=0
    _
  %s6 = ssub.s32 1, %s4
  %s7 = scalar_select 0, %s6, %s4
  $region1: #{tpu_custom_call.1} parent=0
    #allocation2 [shape = 'u8[32768]{0}', space=vmem, size = 0x8000, scoped, tag = 'input window, operand 0, single buffered']
    #allocation3 [shape = 's32[1]{0}', space=sflag, size = 0x4, scoped, tag = 'scoped memory for tpu_custom_call.1']
    #allocation4 [shape = 'u8[4096]{0}', space=vmem, size = 0x1000, scoped, tag = 'input window, operand 1, single buffered']
    #allocation5 [shape = 's32[1]{0}', space=sflag, size = 0x4, scoped, tag = 'scoped memory for tpu_custom_call.1']
    #allocation6 [shape = 'u8[200704]{0}', space=vmem, size = 0x31000, scoped, tag = 'input window, operand 2, single buffered']
    %8 = vsyncpa [#allocation3], 0
    %9 = vsyncpa [#allocation5], 0
    // Predicated region
    $region2: #{tpu_custom_call.1} parent=1 // pred_check
      _
    $region3: #{tpu_custom_call.1} parent=1 // pred_check_branch
      %11 = sbr.rel (0) target = $region5
    $region4: #{tpu_custom_call.1} parent=1 // pred_region
      %13 = vsyncadd [#allocation3], 0
      %s14 = sshll.u32 %s0, 4
      %s15 = int_to_ptr.hbm [resolvable:$true] %s14
      %s16 = sshll.u32 [#allocation2], 4
      %s17 = int_to_ptr.vmem [resolvable:$true] %s16
      %22 = dma.hbm_to_vmem [thread:$0]  %s15, 1024, %s17, [#allocation3], 128, 128, 8
    $region5: #{tpu_custom_call.1} parent=1 // pred_fallthru
      _
    // Predicated region
    $region6: #{tpu_custom_call.1} parent=1 // pred_check
      _
    $region7: #{tpu_custom_call.1} parent=1 // pred_check_branch
      %24 = sbr.rel (0) target = $region9
    $region8: #{tpu_custom_call.1} parent=1 // pred_region
      %26 = vsyncadd [#allocation5], 0
      %s28 = sshll.u32 %s1, 4
      %s29 = int_to_ptr.hbm [resolvable:$true] %s28
      %s30 = sshll.u32 [#allocation4], 4
      %s31 = int_to_ptr.vmem [resolvable:$true] %s30
      %33 = dma.hbm_to_vmem [thread:$0]  %s29, 128, %s31, [#allocation5]
    $region9: #{tpu_custom_call.1} parent=1 // pred_fallthru
      _
    // Predicated region
    $region10: #{tpu_custom_call.1} parent=1 // pred_check
      _
    $region11: #{tpu_custom_call.1} parent=1 // pred_check_branch
      %35 = sbr.rel (0) target = $region13
    $region12: #{tpu_custom_call.1} parent=1 // pred_region
      %37 = vsyncadd [#allocation5], 0
      %s38 = sshll.u32 %s2, 4
      %s39 = int_to_ptr.hbm [resolvable:$true] %s38
      %s40 = sshll.u32 [#allocation6], 4
      %s41 = int_to_ptr.vmem [resolvable:$true] %s40
      %46 = dma.hbm_to_vmem [thread:$0]  %s39, 6272, %s41, [#allocation5], 128, 128, 8
    $region13: #{tpu_custom_call.1} parent=1 // pred_fallthru
      _
    // Predicated region
    $region14: #{tpu_custom_call.1} parent=1 // pred_check
      _
    $region15: #{tpu_custom_call.1} parent=1 // pred_check_branch
      %48 = sbr.rel (0) target = $region17
    $region16: #{tpu_custom_call.1} parent=1 // pred_region
      %50 = dma.done [#allocation3], 1024
    $region17: #{tpu_custom_call.1} parent=1 // pred_fallthru
      _
    // Predicated region
    $region18: #{tpu_custom_call.1} parent=1 // pred_check
      _
    $region19: #{tpu_custom_call.1} parent=1 // pred_check_branch
      %52 = sbr.rel (0) target = $region21
    $region20: #{tpu_custom_call.1} parent=1 // pred_region
      %54 = dma.done [#allocation5], 128
    $region21: #{tpu_custom_call.1} parent=1 // pred_fallthru
      _
    // Predicated region
    $region22: #{tpu_custom_call.1} parent=1 // pred_check
      _
    $region23: #{tpu_custom_call.1} parent=1 // pred_check_branch
      %56 = sbr.rel (0) target = $region25
    $region24: #{tpu_custom_call.1} parent=1 // pred_region
      %58 = dma.done [#allocation5], 6272
    $region25: #{tpu_custom_call.1} parent=1 // pred_fallthru
      _
    %v59 = vld [vmem:[#allocation4] sm:$0xff]
    %vm60 = vcmask 523264
    %v61 = vsel %vm60, %v59, 0.0
    %62 = vadd.xlane.f32.xlu0 %v61
    %v63 = vpop.xlane.xlu0 %62
    %v64 = vrot.slane %v63, 4
    %v65 = vadd.f32 %v63, %v64
    %v66 = vrot.slane %v65, 2
    %v67 = vadd.f32 %v65, %v66
    %v68 = vrot.slane %v67, 1
    %v69 = vadd.f32 %v67, %v68
    %s70 = vtos %v69
    %v71 = vmul.f32 %v59, %v59
    %v72 = vsel %vm60, %v71, 0.0
    %73 = vadd.xlane.f32.xlu0 %v72
    %v74 = vpop.xlane.xlu0 %73
    %v75 = vrot.slane %v74, 4
    %v76 = vadd.f32 %v74, %v75
    %v77 = vrot.slane %v76, 2
    %v78 = vadd.f32 %v76, %v77
    %v79 = vrot.slane %v78, 1
    %v80 = vadd.f32 %v78, %v79
    %s81 = vtos %v80
    %v82 = vrcp.pop 100.0
    %v83 = vmul.f32 100.0, %v82
    %v84 = vsub.f32 1.0, %v83
    %v85 = vmul.f32 %v82, %v84
    %v86 = vadd.f32 %v82, %v85
    %vm87 = vweird.f32 %v82
    %v88 = vsel %vm87, %v82, %v86
    %s89 = vtos %v88
    %s90 = smul.f32 %s70, %s89
    %s91 = smul.f32 %s70, %s70
    %v92 = vrcp.pop 100.0
    %v93 = vmul.f32 100.0, %v92
    %v94 = vsub.f32 1.0, %v93
    %v95 = vmul.f32 %v92, %v94
    %v96 = vadd.f32 %v92, %v95
    %vm97 = vweird.f32 %v92
    %v98 = vsel %vm97, %v92, %v96
    %s99 = vtos %v98
    %s100 = smul.f32 %s91, %s99
    %s101 = ssub.f32 %s81, %s100
    %v102 = vrcp.pop 99.0
    %v103 = vmul.f32 99.0, %v102
    %v104 = vsub.f32 1.0, %v103
    %v105 = vmul.f32 %v102, %v104
    %v106 = vadd.f32 %v102, %v105
    %vm107 = vweird.f32 %v102
    %v108 = vsel %vm107, %v102, %v106
    %s109 = vtos %v108
    %s110 = smul.f32 %s101, %s109
    %v111 = vstv %s110
    %v112 = vrsqrt.pop %v111
    %v113 = vmul.f32 %v112, %v111
    %v114 = vmul.f32 %v113, %v112
    %v115 = vmul.f32 0.5, %v114
    %v116 = vsub.f32 1.5, %v115
    %v117 = vmul.f32 %v112, %v116
    %v118 = vmul.f32 %v111, %v117
    %vm119 = vcmp.eq.f32.partialorder %v111, inf
    %v120 = vsel %vm119, %v111, %v118
    %vm121 = vcmp.eq.f32.partialorder %v111, 0.0
    %v122 = vand.u32 %v111, 2147483648
    %v123 = vsel %vm121, %v122, %v120
    %s124 = vtos %v123
    %s125 = sadd.f32 %s124, 1e-12
    %v126 = vstv %s125
    %v127 = vrcp.pop %v126
    %v128 = vmul.f32 %v126, %v127
    %v129 = vsub.f32 1.0, %v128
    %v130 = vmul.f32 %v127, %v129
    %v131 = vadd.f32 %v127, %v130
    %vm132 = vweird.f32 %v126
    %vm133 = vweird.f32 %v127
    %vm134 = vmor %vm132, %vm133
    %v135 = vsel %vm134, %v127, %v131
    %v136 = vand.u32 2147483647, %v126
    %vm137 = vcmp.eq.f32.partialorder %v136, 8.507059e+37
    %v138 = vand.u32 %v126, 2147483648
    %v139 = vor.u32 1.1754944e-38, %v138
    %v140 = vsel %vm137, %v139, %v135
    %s141 = vtos %v140
    %v142 = vld [vmem:[#allocation2] sm:$0xff]
    %v143 = vld [vmem:[#allocation2 + $0x8] sm:$0xff]
    %v144 = vld [vmem:[#allocation2 + $0x10] sm:$0xff]
    %v145 = vld [vmem:[#allocation2 + $0x18] sm:$0xff]
    %v146 = vld [vmem:[#allocation2 + $0x20] sm:$0xff]
    %v147 = vld [vmem:[#allocation2 + $0x28] sm:$0xff]
    %v148 = vld [vmem:[#allocation2 + $0x30] sm:$0xff]
    %v149 = vld [vmem:[#allocation2 + $0x38] sm:$0xff]
    %v150 = vld [vmem:[#allocation6] sm:$0xff]
    %v151 = vld [vmem:[#allocation6 + $0x8] sm:$0xff]
    %v152 = vld [vmem:[#allocation6 + $0x10] sm:$0xff]
    %v153 = vld [vmem:[#allocation6 + $0x18] sm:$0xff]
    %v154 = vld [vmem:[#allocation6 + $0x20] sm:$0xff]
    %v155 = vld [vmem:[#allocation6 + $0x28] sm:$0xff]
    %v156 = vld [vmem:[#allocation6 + $0x30] sm:$0xff]
    %v157 = vld [vmem:[#allocation6 + $0x38] sm:$0xff]
    %v158 = vld [vmem:[#allocation6 + $0x40] sm:$0xff]
    %v159 = vld [vmem:[#allocation6 + $0x48] sm:$0xff]
    %v160 = vld [vmem:[#allocation6 + $0x50] sm:$0xff]
    %v161 = vld [vmem:[#allocation6 + $0x58] sm:$0xff]
    %v162 = vld [vmem:[#allocation6 + $0x60] sm:$0xff]
    %v163 = vld [vmem:[#allocation6 + $0x68] sm:$0xff]
    %v164 = vld [vmem:[#allocation6 + $0x70] sm:$0xff]
    %v165 = vld [vmem:[#allocation6 + $0x78] sm:$0xff]
    %v166 = vld [vmem:[#allocation6 + $0xa0] sm:$0x1]
    %v167 = vperm.slane %v166, 0
    %168 = vmatpush.msra.mxu0 %v165
    %169 = vmatpush.msra.mxu0 %v164
    %170 = vmatpush.msra.mxu0 %v163
    %171 = vmatpush.msra.mxu0 %v162
    %172 = vmatpush.msra.mxu0 %v161
    %173 = vmatpush.msra.mxu0 %v160
    %174 = vmatpush.msra.mxu0 %v159
    %175 = vmatpush.msra.mxu0 %v158
    %176 = vmatpush.msra.mxu0 %v157
    %177 = vmatpush.msra.mxu0 %v156
    %178 = vmatpush.msra.mxu0 %v155
    %179 = vmatpush.msra.mxu0 %v154
    %180 = vmatpush.msra.mxu0 %v153
    %181 = vmatpush.msra.mxu0 %v152
    %182 = vmatpush.msra.mxu0 %v151
    %183 = vmatpush.msra.mxu0 %v150
    %184 = vmatmul.f32.gmra.mxu0 %v142
    %v185 = vpop.f32.mrf.mxu0
    %v186 = vadd.f32 %v167, %v185
    %187 = vmatmul.f32.gmra.mxu0 %v143
    %v188 = vpop.f32.mrf.mxu0
    %v189 = vadd.f32 %v167, %v188
    %190 = vmatmul.f32.gmra.mxu0 %v144
    %v191 = vpop.f32.mrf.mxu0
    %v192 = vadd.f32 %v167, %v191
    %193 = vmatmul.f32.gmra.mxu0 %v145
    %v194 = vpop.f32.mrf.mxu0
    %v195 = vadd.f32 %v167, %v194
    %196 = vmatmul.f32.gmra.mxu0 %v146
    %v197 = vpop.f32.mrf.mxu0
    %v198 = vadd.f32 %v167, %v197
    %199 = vmatmul.f32.gmra.mxu0 %v147
    %v200 = vpop.f32.mrf.mxu0
    %v201 = vadd.f32 %v167, %v200
    %202 = vmatmul.f32.gmra.mxu0 %v148
    %v203 = vpop.f32.mrf.mxu0
    %v204 = vadd.f32 %v167, %v203
    %205 = vmatmul.f32.gmra.mxu0 %v149
    %v206 = vpop.f32.mrf.mxu0
    %v207 = vadd.f32 %v167, %v206
    %208 = vdwg.mxu0
    %v209 = vld [vmem:[#allocation6 + $0x80] sm:$0xff]
    %v210 = vld [vmem:[#allocation6 + $0x88] sm:$0xff]
    %v211 = vld [vmem:[#allocation6 + $0x90] sm:$0xff]
    %v212 = vld [vmem:[#allocation6 + $0x98] sm:$0xff]
    %vm213 = vcmask 261120
    %v215 = vsel %vm213, 0.0, 0
    %217 = vmatpush.msra.mxu0 0.0
    %218 = vmatpush.msra.mxu0 0.0
    %219 = vmatpush.msra.mxu0 0.0
    %220 = vmatpush.msra.mxu0 0.0
    %221 = vmatpush.msra.mxu0 0.0
    %222 = vmatpush.msra.mxu0 0.0
    %223 = vmatpush.msra.mxu0 0.0
    %224 = vmatpush.msra.mxu0 0.0
    %225 = vmatpush.msra.mxu0 0.0
    %226 = vmatpush.msra.mxu0 0.0
    %227 = vmatpush.msra.mxu0 0.0
    %228 = vmatpush.msra.mxu0 0.0
    %229 = vmatpush.msra.mxu0 %v212
    %230 = vmatpush.msra.mxu0 %v211
    %231 = vmatpush.msra.mxu0 %v210
    %232 = vmatpush.msra.mxu0 %v209
    %233 = vmatmul.f32.gmra.mxu0 %v215
    %v234 = vpop.f32.mrf.mxu0
    %v235 = vadd.f32 0.0, %v234
    %236 = vdwg.mxu0
    %v237 = vadd.f32 %v186, %v235
    %v238 = vxor.u32 %v237, 2147483648
    %v239 = vmul.f32 %v238, 1.442695
    %v240 = vpow.pop %v239
    %v241 = vadd.f32 %v240, 1.0
    %v242 = vrcp.pop %v241
    %v243 = vmul.f32 %v241, %v242
    %v244 = vsub.f32 1.0, %v243
    %v245 = vmul.f32 %v242, %v244
    %v246 = vadd.f32 %v242, %v245
    %vm247 = vweird.f32 %v241
    %vm248 = vweird.f32 %v242
    %vm249 = vmor %vm247, %vm248
    %v250 = vsel %vm249, %v242, %v246
    %v251 = vand.u32 2147483647, %v241
    %vm252 = vcmp.eq.f32.partialorder %v251, 8.507059e+37
    %v253 = vand.u32 %v241, 2147483648
    %v254 = vor.u32 1.1754944e-38, %v253
    %v255 = vsel %vm252, %v254, %v250
    %v256 = vmul.f32 1.0, %v255
    %v257 = vtanh.pop %v237
    %v258 = vmul.f32 %v256, 0.0
    %260 = vrot.lane.b32.xlu0 %v257, 32
    %v261 = vpop.permute.xlu0 %260
    %v263 = vmul.f32 %v256, %v261
    %265 = vrot.lane.b32.xlu0 %v263, 32
    %v266 = vpop.permute.xlu0 %265
    %v268 = vadd.f32 %v258, %v266
    %v269 = vtanh.pop %v268
    %271 = vrot.lane.b32.xlu0 %v269, 32
    %v272 = vpop.permute.xlu0 %271
    %v274 = vmul.f32 %v256, %v272
    %v275 = vmul.f32 %v142, %v274
    %v276 = vsub.f32 1.0, %v142
    %v277 = vmul.f32 %v276, 0.0
    %v278 = vadd.f32 %v275, %v277
    %280 = vrot.lane.b32.xlu0 %v274, 64
    %v281 = vpop.permute.xlu0 %280
    %v282 = vsel %vm213, %v281, 0
    %284 = vmatpush.msra.mxu0 0.0
    %285 = vmatpush.msra.mxu0 0.0
    %286 = vmatpush.msra.mxu0 0.0
    %287 = vmatpush.msra.mxu0 0.0
    %288 = vmatpush.msra.mxu0 0.0
    %289 = vmatpush.msra.mxu0 0.0
    %290 = vmatpush.msra.mxu0 0.0
    %291 = vmatpush.msra.mxu0 0.0
    %292 = vmatpush.msra.mxu0 0.0
    %293 = vmatpush.msra.mxu0 0.0
    %294 = vmatpush.msra.mxu0 0.0
    %295 = vmatpush.msra.mxu0 0.0
    %296 = vmatpush.msra.mxu0 %v212
    %297 = vmatpush.msra.mxu0 %v211
    %298 = vmatpush.msra.mxu0 %v210
    %299 = vmatpush.msra.mxu0 %v209
    %300 = vmatmul.f32.gmra.mxu0 %v282
    %v301 = vpop.f32.mrf.mxu0
    %v302 = vadd.f32 0.0, %v301
    %303 = vdwg.mxu0
    %v304 = vadd.f32 %v189, %v302
    %v305 = vxor.u32 %v304, 2147483648
    %v306 = vmul.f32 %v305, 1.442695
    %v307 = vpow.pop %v306
    %v308 = vadd.f32 %v307, 1.0
    %v309 = vrcp.pop %v308
    %v310 = vmul.f32 %v308, %v309
    %v311 = vsub.f32 1.0, %v310
    %v312 = vmul.f32 %v309, %v311
    %v313 = vadd.f32 %v309, %v312
    %vm314 = vweird.f32 %v308
    %vm315 = vweird.f32 %v309
    %vm316 = vmor %vm314, %vm315
    %v317 = vsel %vm316, %v309, %v313
    %v318 = vand.u32 2147483647, %v308
    %vm319 = vcmp.eq.f32.partialorder %v318, 8.507059e+37
    %v320 = vand.u32 %v308, 2147483648
    %v321 = vor.u32 1.1754944e-38, %v320
    %v322 = vsel %vm319, %v321, %v317
    %v323 = vmul.f32 1.0, %v322
    %v324 = vtanh.pop %v304
    %v325 = vmul.f32 %v323, %v268
    %327 = vrot.lane.b32.xlu0 %v324, 32
    %v328 = vpop.permute.xlu0 %327
    %v330 = vmul.f32 %v323, %v328
    %332 = vrot.lane.b32.xlu0 %v330, 32
    %v333 = vpop.permute.xlu0 %332
    %v335 = vadd.f32 %v325, %v333
    %v336 = vtanh.pop %v335
    %338 = vrot.lane.b32.xlu0 %v336, 32
    %v339 = vpop.permute.xlu0 %338
    %v341 = vmul.f32 %v323, %v339
    %v342 = vmul.f32 %v143, %v341
    %v343 = vsub.f32 1.0, %v143
    %v344 = vmul.f32 %v343, %v278
    %v345 = vadd.f32 %v342, %v344
    %347 = vrot.lane.b32.xlu0 %v341, 64
    %v348 = vpop.permute.xlu0 %347
    %v349 = vsel %vm213, %v348, 0
    %351 = vmatpush.msra.mxu0 0.0
    %352 = vmatpush.msra.mxu0 0.0
    %353 = vmatpush.msra.mxu0 0.0
    %354 = vmatpush.msra.mxu0 0.0
    %355 = vmatpush.msra.mxu0 0.0
    %356 = vmatpush.msra.mxu0 0.0
    %357 = vmatpush.msra.mxu0 0.0
    %358 = vmatpush.msra.mxu0 0.0
    %359 = vmatpush.msra.mxu0 0.0
    %360 = vmatpush.msra.mxu0 0.0
    %361 = vmatpush.msra.mxu0 0.0
    %362 = vmatpush.msra.mxu0 0.0
    %363 = vmatpush.msra.mxu0 %v212
    %364 = vmatpush.msra.mxu0 %v211
    %365 = vmatpush.msra.mxu0 %v210
    %366 = vmatpush.msra.mxu0 %v209
    %367 = vmatmul.f32.gmra.mxu0 %v349
    %v368 = vpop.f32.mrf.mxu0
    %v369 = vadd.f32 0.0, %v368
    %370 = vdwg.mxu0
    %v371 = vadd.f32 %v192, %v369
    %v372 = vxor.u32 %v371, 2147483648
    %v373 = vmul.f32 %v372, 1.442695
    %v374 = vpow.pop %v373
    %v375 = vadd.f32 %v374, 1.0
    %v376 = vrcp.pop %v375
    %v377 = vmul.f32 %v375, %v376
    %v378 = vsub.f32 1.0, %v377
    %v379 = vmul.f32 %v376, %v378
    %v380 = vadd.f32 %v376, %v379
    %vm381 = vweird.f32 %v375
    %vm382 = vweird.f32 %v376
    %vm383 = vmor %vm381, %vm382
    %v384 = vsel %vm383, %v376, %v380
    %v385 = vand.u32 2147483647, %v375
    %vm386 = vcmp.eq.f32.partialorder %v385, 8.507059e+37
    %v387 = vand.u32 %v375, 2147483648
    %v388 = vor.u32 1.1754944e-38, %v387
    %v389 = vsel %vm386, %v388, %v384
    %v390 = vmul.f32 1.0, %v389
    %v391 = vtanh.pop %v371
    %v392 = vmul.f32 %v390, %v335
    %394 = vrot.lane.b32.xlu0 %v391, 32
    %v395 = vpop.permute.xlu0 %394
    %v397 = vmul.f32 %v390, %v395
    %399 = vrot.lane.b32.xlu0 %v397, 32
    %v400 = vpop.permute.xlu0 %399
    %v402 = vadd.f32 %v392, %v400
    %v403 = vtanh.pop %v402
    %405 = vrot.lane.b32.xlu0 %v403, 32
    %v406 = vpop.permute.xlu0 %405
    %v408 = vmul.f32 %v390, %v406
    %v409 = vmul.f32 %v144, %v408
    %v410 = vsub.f32 1.0, %v144
    %v411 = vmul.f32 %v410, %v345
    %v412 = vadd.f32 %v409, %v411
    %414 = vrot.lane.b32.xlu0 %v408, 64
    %v415 = vpop.permute.xlu0 %414
    %v416 = vsel %vm213, %v415, 0
    %418 = vmatpush.msra.mxu0 0.0
    %419 = vmatpush.msra.mxu0 0.0
    %420 = vmatpush.msra.mxu0 0.0
    %421 = vmatpush.msra.mxu0 0.0
    %422 = vmatpush.msra.mxu0 0.0
    %423 = vmatpush.msra.mxu0 0.0
    %424 = vmatpush.msra.mxu0 0.0
    %425 = vmatpush.msra.mxu0 0.0
    %426 = vmatpush.msra.mxu0 0.0
    %427 = vmatpush.msra.mxu0 0.0
    %428 = vmatpush.msra.mxu0 0.0
    %429 = vmatpush.msra.mxu0 0.0
    %430 = vmatpush.msra.mxu0 %v212
    %431 = vmatpush.msra.mxu0 %v211
    %432 = vmatpush.msra.mxu0 %v210
    %433 = vmatpush.msra.mxu0 %v209
    %434 = vmatmul.f32.gmra.mxu0 %v416
    %v435 = vpop.f32.mrf.mxu0
    %v436 = vadd.f32 0.0, %v435
    %437 = vdwg.mxu0
    %v438 = vadd.f32 %v195, %v436
    %v439 = vxor.u32 %v438, 2147483648
    %v440 = vmul.f32 %v439, 1.442695
    %v441 = vpow.pop %v440
    %v442 = vadd.f32 %v441, 1.0
    %v443 = vrcp.pop %v442
    %v444 = vmul.f32 %v442, %v443
    %v445 = vsub.f32 1.0, %v444
    %v446 = vmul.f32 %v443, %v445
    %v447 = vadd.f32 %v443, %v446
    %vm448 = vweird.f32 %v442
    %vm449 = vweird.f32 %v443
    %vm450 = vmor %vm448, %vm449
    %v451 = vsel %vm450, %v443, %v447
    %v452 = vand.u32 2147483647, %v442
    %vm453 = vcmp.eq.f32.partialorder %v452, 8.507059e+37
    %v454 = vand.u32 %v442, 2147483648
    %v455 = vor.u32 1.1754944e-38, %v454
    %v456 = vsel %vm453, %v455, %v451
    %v457 = vmul.f32 1.0, %v456
    %v458 = vtanh.pop %v438
    %v459 = vmul.f32 %v457, %v402
    %461 = vrot.lane.b32.xlu0 %v458, 32
    %v462 = vpop.permute.xlu0 %461
    %v464 = vmul.f32 %v457, %v462
    %466 = vrot.lane.b32.xlu0 %v464, 32
    %v467 = vpop.permute.xlu0 %466
    %v469 = vadd.f32 %v459, %v467
    %v470 = vtanh.pop %v469
    %472 = vrot.lane.b32.xlu0 %v470, 32
    %v473 = vpop.permute.xlu0 %472
    %v475 = vmul.f32 %v457, %v473
    %v476 = vmul.f32 %v145, %v475
    %v477 = vsub.f32 1.0, %v145
    %v478 = vmul.f32 %v477, %v412
    %v479 = vadd.f32 %v476, %v478
    %481 = vrot.lane.b32.xlu0 %v475, 64
    %v482 = vpop.permute.xlu0 %481
    %v483 = vsel %vm213, %v482, 0
    %485 = vmatpush.msra.mxu0 0.0
    %486 = vmatpush.msra.mxu0 0.0
    %487 = vmatpush.msra.mxu0 0.0
    %488 = vmatpush.msra.mxu0 0.0
    %489 = vmatpush.msra.mxu0 0.0
    %490 = vmatpush.msra.mxu0 0.0
    %491 = vmatpush.msra.mxu0 0.0
    %492 = vmatpush.msra.mxu0 0.0
    %493 = vmatpush.msra.mxu0 0.0
    %494 = vmatpush.msra.mxu0 0.0
    %495 = vmatpush.msra.mxu0 0.0
    %496 = vmatpush.msra.mxu0 0.0
    %497 = vmatpush.msra.mxu0 %v212
    %498 = vmatpush.msra.mxu0 %v211
    %499 = vmatpush.msra.mxu0 %v210
    %500 = vmatpush.msra.mxu0 %v209
    %501 = vmatmul.f32.gmra.mxu0 %v483
    %v502 = vpop.f32.mrf.mxu0
    %v503 = vadd.f32 0.0, %v502
    %504 = vdwg.mxu0
    %v505 = vadd.f32 %v198, %v503
    %v506 = vxor.u32 %v505, 2147483648
    %v507 = vmul.f32 %v506, 1.442695
    %v508 = vpow.pop %v507
    %v509 = vadd.f32 %v508, 1.0
    %v510 = vrcp.pop %v509
    %v511 = vmul.f32 %v509, %v510
    %v512 = vsub.f32 1.0, %v511
    %v513 = vmul.f32 %v510, %v512
    %v514 = vadd.f32 %v510, %v513
    %vm515 = vweird.f32 %v509
    %vm516 = vweird.f32 %v510
    %vm517 = vmor %vm515, %vm516
    %v518 = vsel %vm517, %v510, %v514
    %v519 = vand.u32 2147483647, %v509
    %vm520 = vcmp.eq.f32.partialorder %v519, 8.507059e+37
    %v521 = vand.u32 %v509, 2147483648
    %v522 = vor.u32 1.1754944e-38, %v521
    %v523 = vsel %vm520, %v522, %v518
    %v524 = vmul.f32 1.0, %v523
    %v525 = vtanh.pop %v505
    %v526 = vmul.f32 %v524, %v469
    %528 = vrot.lane.b32.xlu0 %v525, 32
    %v529 = vpop.permute.xlu0 %528
    %v531 = vmul.f32 %v524, %v529
    %533 = vrot.lane.b32.xlu0 %v531, 32
    %v534 = vpop.permute.xlu0 %533
    %v536 = vadd.f32 %v526, %v534
    %v537 = vtanh.pop %v536
    %539 = vrot.lane.b32.xlu0 %v537, 32
    %v540 = vpop.permute.xlu0 %539
    %v542 = vmul.f32 %v524, %v540
    %v543 = vmul.f32 %v146, %v542
    %v544 = vsub.f32 1.0, %v146
    %v545 = vmul.f32 %v544, %v479
    %v546 = vadd.f32 %v543, %v545
    %548 = vrot.lane.b32.xlu0 %v542, 64
    %v549 = vpop.permute.xlu0 %548
    %v550 = vsel %vm213, %v549, 0
    %552 = vmatpush.msra.mxu0 0.0
    %553 = vmatpush.msra.mxu0 0.0
    %554 = vmatpush.msra.mxu0 0.0
    %555 = vmatpush.msra.mxu0 0.0
    %556 = vmatpush.msra.mxu0 0.0
    %557 = vmatpush.msra.mxu0 0.0
    %558 = vmatpush.msra.mxu0 0.0
    %559 = vmatpush.msra.mxu0 0.0
    %560 = vmatpush.msra.mxu0 0.0
    %561 = vmatpush.msra.mxu0 0.0
    %562 = vmatpush.msra.mxu0 0.0
    %563 = vmatpush.msra.mxu0 0.0
    %564 = vmatpush.msra.mxu0 %v212
    %565 = vmatpush.msra.mxu0 %v211
    %566 = vmatpush.msra.mxu0 %v210
    %567 = vmatpush.msra.mxu0 %v209
    %568 = vmatmul.f32.gmra.mxu0 %v550
    %v569 = vpop.f32.mrf.mxu0
    %v570 = vadd.f32 0.0, %v569
    %571 = vdwg.mxu0
    %v572 = vadd.f32 %v201, %v570
    %v573 = vxor.u32 %v572, 2147483648
    %v574 = vmul.f32 %v573, 1.442695
    %v575 = vpow.pop %v574
    %v576 = vadd.f32 %v575, 1.0
    %v577 = vrcp.pop %v576
    %v578 = vmul.f32 %v576, %v577
    %v579 = vsub.f32 1.0, %v578
    %v580 = vmul.f32 %v577, %v579
    %v581 = vadd.f32 %v577, %v580
    %vm582 = vweird.f32 %v576
    %vm583 = vweird.f32 %v577
    %vm584 = vmor %vm582, %vm583
    %v585 = vsel %vm584, %v577, %v581
    %v586 = vand.u32 2147483647, %v576
    %vm587 = vcmp.eq.f32.partialorder %v586, 8.507059e+37
    %v588 = vand.u32 %v576, 2147483648
    %v589 = vor.u32 1.1754944e-38, %v588
    %v590 = vsel %vm587, %v589, %v585
    %v591 = vmul.f32 1.0, %v590
    %v592 = vtanh.pop %v572
    %v593 = vmul.f32 %v591, %v536
    %595 = vrot.lane.b32.xlu0 %v592, 32
    %v596 = vpop.permute.xlu0 %595
    %v598 = vmul.f32 %v591, %v596
    %600 = vrot.lane.b32.xlu0 %v598, 32
    %v601 = vpop.permute.xlu0 %600
    %v603 = vadd.f32 %v593, %v601
    %v604 = vtanh.pop %v603
    %606 = vrot.lane.b32.xlu0 %v604, 32
    %v607 = vpop.permute.xlu0 %606
    %v609 = vmul.f32 %v591, %v607
    %v610 = vmul.f32 %v147, %v609
    %v611 = vsub.f32 1.0, %v147
    %v612 = vmul.f32 %v611, %v546
    %v613 = vadd.f32 %v610, %v612
    %615 = vrot.lane.b32.xlu0 %v609, 64
    %v616 = vpop.permute.xlu0 %615
    %v617 = vsel %vm213, %v616, 0
    %619 = vmatpush.msra.mxu0 0.0
    %620 = vmatpush.msra.mxu0 0.0
    %621 = vmatpush.msra.mxu0 0.0
    %622 = vmatpush.msra.mxu0 0.0
    %623 = vmatpush.msra.mxu0 0.0
    %624 = vmatpush.msra.mxu0 0.0
    %625 = vmatpush.msra.mxu0 0.0
    %626 = vmatpush.msra.mxu0 0.0
    %627 = vmatpush.msra.mxu0 0.0
    %628 = vmatpush.msra.mxu0 0.0
    %629 = vmatpush.msra.mxu0 0.0
    %630 = vmatpush.msra.mxu0 0.0
    %631 = vmatpush.msra.mxu0 %v212
    %632 = vmatpush.msra.mxu0 %v211
    %633 = vmatpush.msra.mxu0 %v210
    %634 = vmatpush.msra.mxu0 %v209
    %635 = vmatmul.f32.gmra.mxu0 %v617
    %v636 = vpop.f32.mrf.mxu0
    %v637 = vadd.f32 0.0, %v636
    %638 = vdwg.mxu0
    %v639 = vadd.f32 %v204, %v637
    %v640 = vxor.u32 %v639, 2147483648
    %v641 = vmul.f32 %v640, 1.442695
    %v642 = vpow.pop %v641
    %v643 = vadd.f32 %v642, 1.0
    %v644 = vrcp.pop %v643
    %v645 = vmul.f32 %v643, %v644
    %v646 = vsub.f32 1.0, %v645
    %v647 = vmul.f32 %v644, %v646
    %v648 = vadd.f32 %v644, %v647
    %vm649 = vweird.f32 %v643
    %vm650 = vweird.f32 %v644
    %vm651 = vmor %vm649, %vm650
    %v652 = vsel %vm651, %v644, %v648
    %v653 = vand.u32 2147483647, %v643
    %vm654 = vcmp.eq.f32.partialorder %v653, 8.507059e+37
    %v655 = vand.u32 %v643, 2147483648
    %v656 = vor.u32 1.1754944e-38, %v655
    %v657 = vsel %vm654, %v656, %v652
    %v658 = vmul.f32 1.0, %v657
    %v659 = vtanh.pop %v639
    %v660 = vmul.f32 %v658, %v603
    %662 = vrot.lane.b32.xlu0 %v659, 32
    %v663 = vpop.permute.xlu0 %662
    %v665 = vmul.f32 %v658, %v663
    %667 = vrot.lane.b32.xlu0 %v665, 32
    %v668 = vpop.permute.xlu0 %667
    %v670 = vadd.f32 %v660, %v668
    %v671 = vtanh.pop %v670
    %673 = vrot.lane.b32.xlu0 %v671, 32
    %v674 = vpop.permute.xlu0 %673
    %v676 = vmul.f32 %v658, %v674
    %v677 = vmul.f32 %v148, %v676
    %v678 = vsub.f32 1.0, %v148
    %v679 = vmul.f32 %v678, %v613
    %v680 = vadd.f32 %v677, %v679
    %682 = vrot.lane.b32.xlu0 %v676, 64
    %v683 = vpop.permute.xlu0 %682
    %v684 = vsel %vm213, %v683, 0
    %686 = vmatpush.msra.mxu0 0.0
    %687 = vmatpush.msra.mxu0 0.0
    %688 = vmatpush.msra.mxu0 0.0
    %689 = vmatpush.msra.mxu0 0.0
    %690 = vmatpush.msra.mxu0 0.0
    %691 = vmatpush.msra.mxu0 0.0
    %692 = vmatpush.msra.mxu0 0.0
    %693 = vmatpush.msra.mxu0 0.0
    %694 = vmatpush.msra.mxu0 0.0
    %695 = vmatpush.msra.mxu0 0.0
    %696 = vmatpush.msra.mxu0 0.0
    %697 = vmatpush.msra.mxu0 0.0
    %698 = vmatpush.msra.mxu0 %v212
    %699 = vmatpush.msra.mxu0 %v211
    %700 = vmatpush.msra.mxu0 %v210
    %701 = vmatpush.msra.mxu0 %v209
    %702 = vmatmul.f32.gmra.mxu0 %v684
    %v703 = vpop.f32.mrf.mxu0
    %v704 = vadd.f32 0.0, %v703
    %705 = vdwg.mxu0
    %v706 = vadd.f32 %v207, %v704
    %v707 = vxor.u32 %v706, 2147483648
    %v708 = vmul.f32 %v707, 1.442695
    %v709 = vpow.pop %v708
    %v710 = vadd.f32 %v709, 1.0
    %v711 = vrcp.pop %v710
    %v712 = vmul.f32 %v710, %v711
    %v713 = vsub.f32 1.0, %v712
    %v714 = vmul.f32 %v711, %v713
    %v715 = vadd.f32 %v711, %v714
    %vm716 = vweird.f32 %v710
    %vm717 = vweird.f32 %v711
    %vm718 = vmor %vm716, %vm717
    %v719 = vsel %vm718, %v711, %v715
    %v720 = vand.u32 2147483647, %v710
    %vm721 = vcmp.eq.f32.partialorder %v720, 8.507059e+37
    %v722 = vand.u32 %v710, 2147483648
    %v723 = vor.u32 1.1754944e-38, %v722
    %v724 = vsel %vm721, %v723, %v719
    %v725 = vmul.f32 1.0, %v724
    %v726 = vtanh.pop %v706
    %v727 = vmul.f32 %v725, %v670
    %729 = vrot.lane.b32.xlu0 %v726, 32
    %v730 = vpop.permute.xlu0 %729
    %v732 = vmul.f32 %v725, %v730
    %734 = vrot.lane.b32.xlu0 %v732, 32
    %v735 = vpop.permute.xlu0 %734
    %v737 = vadd.f32 %v727, %v735
    %v738 = vtanh.pop %v737
    %740 = vrot.lane.b32.xlu0 %v738, 32
    %v741 = vpop.permute.xlu0 %740
    %v743 = vmul.f32 %v725, %v741
    %v744 = vmul.f32 %v149, %v743
    %v745 = vsub.f32 1.0, %v149
    %v746 = vmul.f32 %v745, %v680
    %v747 = vadd.f32 %v744, %v746
    %v748 = vld [vmem:[#allocation6 + $0xa5] sm:$0x1]
    %v749 = vstv %s90
    %v750 = vsub.f32 %v59, %v749
    %v751 = vperm.slane %v748, 0
    %v752 = vmul.f32 %v751, %v750
    %v753 = vstv %s141
    %v754 = vmul.f32 %v752, %v753
    %v755 = vld [vmem:[#allocation6 + $0xa8] sm:$0xff]
    %v756 = vld [vmem:[#allocation6 + $0xb0] sm:$0xff]
    %v757 = vld [vmem:[#allocation6 + $0xb8] sm:$0xff]
    %v758 = vld [vmem:[#allocation6 + $0xc0] sm:$0xff]
    %v759 = vld [vmem:[#allocation6 + $0xc8] sm:$0xff]
    %v760 = vld [vmem:[#allocation6 + $0xd0] sm:$0xff]
    %v761 = vld [vmem:[#allocation6 + $0xd8] sm:$0xff]
    %v762 = vld [vmem:[#allocation6 + $0xe0] sm:$0xff]
    %v763 = vld [vmem:[#allocation6 + $0xe8] sm:$0xff]
    %v764 = vld [vmem:[#allocation6 + $0xf0] sm:$0xff]
    %v765 = vld [vmem:[#allocation6 + $0xf8] sm:$0xff]
    %v766 = vld [vmem:[#allocation6 + $0x100] sm:$0xff]
    %v768 = vsel %vm60, %v754, 0
    %770 = vmatpush.msra.mxu0 0.0
    %771 = vmatpush.msra.mxu0 0.0
    %772 = vmatpush.msra.mxu0 0.0
    %773 = vmatpush.msra.mxu0 0.0
    %774 = vmatpush.msra.mxu0 0.0
    %775 = vmatpush.msra.mxu0 0.0
    %776 = vmatpush.msra.mxu0 0.0
    %777 = vmatpush.msra.mxu0 0.0
    %778 = vmatpush.msra.mxu0 %v766
    %779 = vmatpush.msra.mxu0 %v765
    %780 = vmatpush.msra.mxu0 %v764
    %781 = vmatpush.msra.mxu0 %v763
    %782 = vmatpush.msra.mxu0 %v762
    %783 = vmatpush.msra.mxu0 %v761
    %784 = vmatpush.msra.mxu0 %v760
    %785 = vmatpush.msra.mxu0 %v759
    %786 = vmatmul.f32.gmra.mxu0 %v768
    %v787 = vpop.f32.mrf.mxu0
    %v788 = vadd.f32 0.0, %v787
    %789 = vdwg.mxu0
    %791 = vrot.lane.b32.xlu0 %v747, 64
    %v792 = vpop.permute.xlu0 %791
    %v793 = vsel %vm213, %v792, 0
    %795 = vmatpush.msra.mxu0 0.0
    %796 = vmatpush.msra.mxu0 0.0
    %797 = vmatpush.msra.mxu0 0.0
    %798 = vmatpush.msra.mxu0 0.0
    %799 = vmatpush.msra.mxu0 0.0
    %800 = vmatpush.msra.mxu0 0.0
    %801 = vmatpush.msra.mxu0 0.0
    %802 = vmatpush.msra.mxu0 0.0
    %803 = vmatpush.msra.mxu0 0.0
    %804 = vmatpush.msra.mxu0 0.0
    %805 = vmatpush.msra.mxu0 0.0
    %806 = vmatpush.msra.mxu0 0.0
    %807 = vmatpush.msra.mxu0 %v758
    %808 = vmatpush.msra.mxu0 %v757
    %809 = vmatpush.msra.mxu0 %v756
    %810 = vmatpush.msra.mxu0 %v755
    %811 = vmatmul.f32.gmra.mxu0 %v793
    %v812 = vpop.f32.mrf.mxu0
    %v813 = vadd.f32 %v788, %v812
    %814 = vdwg.mxu0
    %v815 = vld [vmem:[#allocation6 + $0xa1] sm:$0x1]
    %v816 = vperm.slane %v815, 0
    %v817 = vadd.f32 %v813, %v816
    %v818 = vmax.f32 %v817, 0.0
    %v819 = vld [vmem:[#allocation6 + $0x108] sm:$0xff]
    %v820 = vld [vmem:[#allocation6 + $0x110] sm:$0xff]
    %v821 = vld [vmem:[#allocation6 + $0x118] sm:$0xff]
    %v822 = vld [vmem:[#allocation6 + $0x120] sm:$0xff]
    %v823 = vld [vmem:[#allocation6 + $0x128] sm:$0xff]
    %v824 = vld [vmem:[#allocation6 + $0x130] sm:$0xff]
    %v825 = vld [vmem:[#allocation6 + $0x138] sm:$0xff]
    %v826 = vld [vmem:[#allocation6 + $0x140] sm:$0xff]
    %v827 = vld [vmem:[#allocation6 + $0x148] sm:$0xff]
    %v828 = vld [vmem:[#allocation6 + $0x150] sm:$0xff]
    %v829 = vld [vmem:[#allocation6 + $0x158] sm:$0xff]
    %v830 = vld [vmem:[#allocation6 + $0x160] sm:$0xff]
    %v831 = vld [vmem:[#allocation6 + $0x168] sm:$0xff]
    %v832 = vld [vmem:[#allocation6 + $0x170] sm:$0xff]
    %v833 = vld [vmem:[#allocation6 + $0x178] sm:$0xff]
    %v834 = vld [vmem:[#allocation6 + $0x180] sm:$0xff]
    %v835 = vld [vmem:[#allocation6 + $0xa2] sm:$0x1]
    %v836 = vperm.slane %v835, 0
    %837 = vmatpush.msra.mxu0 %v834
    %838 = vmatpush.msra.mxu0 %v833
    %839 = vmatpush.msra.mxu0 %v832
    %840 = vmatpush.msra.mxu0 %v831
    %841 = vmatpush.msra.mxu0 %v830
    %842 = vmatpush.msra.mxu0 %v829
    %843 = vmatpush.msra.mxu0 %v828
    %844 = vmatpush.msra.mxu0 %v827
    %845 = vmatpush.msra.mxu0 %v826
    %846 = vmatpush.msra.mxu0 %v825
    %847 = vmatpush.msra.mxu0 %v824
    %848 = vmatpush.msra.mxu0 %v823
    %849 = vmatpush.msra.mxu0 %v822
    %850 = vmatpush.msra.mxu0 %v821
    %851 = vmatpush.msra.mxu0 %v820
    %852 = vmatpush.msra.mxu0 %v819
    %853 = vmatmul.f32.gmra.mxu0 %v818
    %v854 = vpop.f32.mrf.mxu0
    %v855 = vadd.f32 %v836, %v854
    %856 = vdwg.mxu0
    %v857 = vmax.f32 %v855, 0.0
    %v858 = vld [vmem:[#allocation6 + $0xa4] sm:$0x1]
    %v859 = vperm.slane %v858, 0
    %v860 = vmul.f32 %v857, %v859
    %861 = vadd.xlane.f32.xlu0 %v860
    %v862 = vpop.xlane.xlu0 %861
    %v863 = vld [vmem:[#allocation6 + $0xa3] sm:$0x1]
    %v864 = vperm.slane %v863, 0
    %v865 = vadd.f32 %v862, %v864
    %vm866 = vcmask 7168
    %867 = vst.msk [vmem:[%s3] sm:$0xff] %vm866, %v865
    // Predicated region
    $region26: #{tpu_custom_call.1} parent=1 // pred_check
      _
    $region27: #{tpu_custom_call.1} parent=1 // pred_check_branch
      %869 = sbr.rel (0) target = $region29
    $region28: #{tpu_custom_call.1} parent=1 // pred_region
      _
    $region29: #{tpu_custom_call.1} parent=1 // pred_fallthru
      _
    // Predicated region
    $region30: #{tpu_custom_call.1} parent=1 // pred_check
      _
    $region31: #{tpu_custom_call.1} parent=1 // pred_check_branch
      %871 = sbr.rel (0) target = $region33
    $region32: #{tpu_custom_call.1} parent=1 // pred_region
      _
    $region33: #{tpu_custom_call.1} parent=1 // pred_fallthru
      _
    %872 = vsyncpa [#allocation3], 1
    %873 = vsyncpa [#allocation5], 1

</llo_original>
